<compile_context>
chip_gen: v6e
topology: v6e:2x2x1
jax: 0.10.0
libtpu: 0.0.40
codegen_flags: <defaults>
</compile_context>

<pallas_src>
import math

import jax
import jax.numpy as jnp
from jax.experimental import pallas as pl
from jax.experimental.pallas import tpu as pltpu

N = 128  # padded feature width (lane dimension)

_SCALE_RELU = math.sqrt(8.0 / math.pi)
_XI_SQ = math.pi / 8.0
_ALPHA = 4.0 - 2.0 * math.sqrt(2.0)
_BETA = -math.log(math.sqrt(2.0) + 1.0)
_INV_SQRT_2PI = 1.0 / math.sqrt(2.0 * math.pi)


# ---------------------------------------------------------------- activations
def _npn_relu(o_m, o_s):
    # EUP-lean: one rsqrt, one sigmoid, one exp; sqrt derived as o_s * rsqrt(o_s).
    inv_std = jax.lax.rsqrt(o_s)
    std = o_s * inv_std
    z = o_m * inv_std
    sig = jax.nn.sigmoid(_SCALE_RELU * z)
    pdf = std * _INV_SQRT_2PI * jnp.exp(-0.5 * z * z)
    a_m = sig * o_m + pdf
    a_s = sig * (o_m * o_m + o_s) + o_m * pdf - a_m * a_m
    return a_m, a_s


def _npn_sigmoid(o_m, o_s):
    a_m = jax.nn.sigmoid(o_m * jax.lax.rsqrt(1.0 + _XI_SQ * o_s))
    a_s = jax.nn.sigmoid(
        _ALPHA * (o_m + _BETA) * jax.lax.rsqrt(1.0 + _XI_SQ * _ALPHA * _ALPHA * o_s)
    ) - a_m * a_m
    return a_m, a_s


# --------------------------------------------------------------------- kernel
def gosh_kernel(x_ref, w_ref, b_ref, out_ref):
    x = x_ref[...]                     # (1, N) zero-padded flattened input
    xx = x * x

    # ----- layer 1 : NPNLinear(dual_input=False) + NPNRelu -----
    # x_s = x*x, so o_s = (x*x) @ (2*W_s + W_m^2) + b_s  -> single fused matmul.
    xc = jnp.concatenate([x, xx], axis=1)                          # (1, 2N)
    y = jnp.dot(xc, w_ref[0:2 * N, :], preferred_element_type=jnp.float32)
    o_m = y[:, :N] + b_ref[0:1, :N]
    o_s = y[:, N:] + b_ref[0:1, N:]
    a_m, a_s = _npn_relu(o_m, o_s)

    # ----- layer 2 : NPNLinear + NPNRelu -----
    xc = jnp.concatenate([a_m, a_s, a_m * a_m], axis=1)            # (1, 3N)
    y = jnp.dot(xc, w_ref[2 * N:5 * N, :], preferred_element_type=jnp.float32)
    o_m = y[:, :N] + b_ref[1:2, :N]
    o_s = y[:, N:] + b_ref[1:2, N:]
    a_m, a_s = _npn_relu(o_m, o_s)

    # ----- layer 3 : NPNLinear + NPNSigmoid -----
    xc = jnp.concatenate([a_m, a_s, a_m * a_m], axis=1)            # (1, 3N)
    y = jnp.dot(xc, w_ref[5 * N:8 * N, :], preferred_element_type=jnp.float32)
    o_m = y[:, :N] + b_ref[2:3, :N]
    o_s = y[:, N:] + b_ref[2:3, N:]
    a_m, a_s = _npn_sigmoid(o_m, o_s)

    out_ref[...] = jnp.concatenate([a_m, a_s], axis=1)             # (1, 2N)


# --------------------------------------------------- parameter init & packing
def init_npn_linear_params(key, in_c, out_c):
    """Deterministic init mirroring NPNLinear.__init__ shapes."""
    k1, k2, k3 = jax.random.split(key, 3)
    lim = 2.0 * math.sqrt(6.0) / math.sqrt(in_c + out_c)
    w_m = lim * (jax.random.uniform(k1, (in_c, out_c), jnp.float32) - 0.5)
    w_s_sqrt = (1.0 / math.sqrt(in_c + out_c)) * jax.random.uniform(
        k2, (in_c, out_c), jnp.float32)
    b_m = jnp.zeros((1, out_c), jnp.float32)
    b_s_sqrt = 0.01 * jax.random.uniform(k3, (1, out_c), jnp.float32)
    return w_m, w_s_sqrt, b_m, b_s_sqrt


def pack_gosh_params(params):
    """One-time host-side fold: square W_s/b_s, build block weights, pack into
    a single (8N, 2N) weight slab + (8, 2N) bias slab."""
    (w1m, w1s, b1m, b1s), (w2m, w2s, b2m, b2s), (w3m, w3s, b3m, b3s) = params
    in1, out1 = w1m.shape
    in2, out2 = w2m.shape
    in3, out3 = w3m.shape
    assert max(in1, in2, in3, out1, out2, out3) <= N

    W = jnp.zeros((8 * N, 2 * N), jnp.float32)
    B = jnp.zeros((8, 2 * N), jnp.float32)

    def sq(t):
        return t * t

    # layer 1 (dual_input=False): rows [x | x*x]
    W = W.at[0:in1, 0:out1].set(w1m)
    W = W.at[N:N + in1, N:N + out1].set(2.0 * sq(w1s) + w1m * w1m)
    B = B.at[0, 0:out1].set(b1m[0])
    B = B.at[0, N:N + out1].set(sq(b1s)[0])
    B = B.at[0, N + out1:2 * N].set(1.0)     # keep padded-lane variances finite

    # layer 2: rows [a_m | a_s | a_m^2]
    o = 2 * N
    W = W.at[o:o + in2, 0:out2].set(w2m)
    W = W.at[o + N:o + N + in2, N:N + out2].set(sq(w2s) + w2m * w2m)
    W = W.at[o + 2 * N:o + 2 * N + in2, N:N + out2].set(sq(w2s))
    B = B.at[1, 0:out2].set(b2m[0])
    B = B.at[1, N:N + out2].set(sq(b2s)[0])
    B = B.at[1, N + out2:2 * N].set(1.0)

    # layer 3: rows [a_m | a_s | a_m^2]
    o = 5 * N
    W = W.at[o:o + in3, 0:out3].set(w3m)
    W = W.at[o + N:o + N + in3, N:N + out3].set(sq(w3s) + w3m * w3m)
    W = W.at[o + 2 * N:o + 2 * N + in3, N:N + out3].set(sq(w3s))
    B = B.at[2, 0:out3].set(b3m[0])
    B = B.at[2, N:N + out3].set(sq(b3s)[0])
    B = B.at[2, N + out3:2 * N].set(1.0)
    return W, B


# -------------------------------------------------------------------- wrapper
def gosh_forward(d, a, s, packed):
    w_slab, b_slab = packed
    # glue: concat(d.view(-1), a.view(-1), s.view(-1)).reshape(1, -1), zero-pad to N lanes
    x = jnp.concatenate(
        [d.reshape(-1), a.reshape(-1), s.reshape(-1)]).astype(jnp.float32)
    x = jnp.pad(x, (0, N - x.shape[0])).reshape(1, N)

    out = pl.pallas_call(
        gosh_kernel,
        out_shape=jax.ShapeDtypeStruct((1, 2 * N), jnp.float32),
        in_specs=[pl.BlockSpec(memory_space=pltpu.MemorySpace.VMEM)] * 3,
        out_specs=pl.BlockSpec(memory_space=pltpu.MemorySpace.VMEM),
    )(x, w_slab, b_slab)
    return out[:, 0:1], out[:, N:N + 1]


# ----------------------------------------------------- pure-JAX reference (check)
def _npn_linear_ref(x_m, x_s, w_m, w_s_sqrt, b_m, b_s_sqrt):
    w_s = w_s_sqrt * w_s_sqrt
    b_s = b_s_sqrt * b_s_sqrt
    o_m = x_m @ w_m + b_m
    o_s = x_s @ w_s + x_s @ (w_m * w_m) + (x_m * x_m) @ w_s + b_s
    return o_m, o_s


def gosh_reference(d, a, s, params):
    x = jnp.concatenate(
        [d.reshape(-1), a.reshape(-1), s.reshape(-1)]).reshape(1, -1).astype(jnp.float32)
    o_m, o_s = _npn_linear_ref(x, x * x, *params[0])
    a_m, a_s = _npn_relu(o_m, o_s)
    o_m, o_s = _npn_linear_ref(a_m, a_s, *params[1])
    a_m, a_s = _npn_relu(o_m, o_s)
    o_m, o_s = _npn_linear_ref(a_m, a_s, *params[2])
    return _npn_sigmoid(o_m, o_s)


if __name__ == "__main__":
    feats = 32
    n_apps = 7

    key = jax.random.PRNGKey(0)
    kd, ka, ks, kp1, kp2, kp3 = jax.random.split(key, 6)

    # d and a carry `feats` scalars each, s carries the n_apps vector, so the
    # flattened input matches NPNLinear(feats*2 + n_apps, feats).
    d = jax.random.normal(kd, (4, 8), jnp.float32)        # 32 elements
    a = jax.random.normal(ka, (feats,), jnp.float32)      # 32 elements
    s = jax.random.uniform(ks, (n_apps,), jnp.float32)    # 7 elements

    params = [
        init_npn_linear_params(kp1, feats * 2 + n_apps, feats),
        init_npn_linear_params(kp2, feats, feats),
        init_npn_linear_params(kp3, feats, 1),
    ]
    packed = pack_gosh_params(params)   # one-time fold / square / pack

    fwd = jax.jit(gosh_forward)
    x_out, s_out = fwd(d, a, s, packed)
    jax.block_until_ready((x_out, s_out))
    assert x_out.shape == (1, 1) and s_out.shape == (1, 1)

    # sanity check against the unfused pure-JAX NPN reference
    rm, rs = gosh_reference(d, a, s, params)
    assert float(jnp.max(jnp.abs(x_out - rm))) < 1e-3
    assert float(jnp.max(jnp.abs(s_out - rs))) < 1e-3

    print("KERNEL_OK")
</pallas_src>

<mosaic_0001>
module attributes {stable_mosaic.version = 11 : i64} {
  func.func @gosh_kernel(%arg0: memref<1x128xf32, #tpu.memory_space<vmem>>, %arg1: memref<1024x256xf32, #tpu.memory_space<vmem>>, %arg2: memref<8x256xf32, #tpu.memory_space<vmem>>, %arg3: memref<1x256xf32, #tpu.memory_space<vmem>>) attributes {dimension_semantics = [], scalar_prefetch = 0 : i64, scratch_operands = 0 : i64, tpu.core_type = #tpu.core_type<tc>} {
    %c0 = arith.constant 0 : index
    %c0_0 = arith.constant 0 : index
    %0 = vector.load %arg0[%c0, %c0_0] : memref<1x128xf32, #tpu.memory_space<vmem>>, vector<1x128xf32>
    %1 = arith.mulf %0, %0 : vector<1x128xf32>
    %2 = tpu.concatenate %0, %1 in 1 : vector<1x128xf32>, vector<1x128xf32> -> vector<1x256xf32>
    %c0_1 = arith.constant 0 : index
    %c0_2 = arith.constant 0 : index
    %3 = vector.load %arg1[%c0_1, %c0_2] : memref<1024x256xf32, #tpu.memory_space<vmem>>, vector<256x256xf32>
    %cst = arith.constant dense<0.000000e+00> : vector<1x256xf32>
    %4 = tpu.matmul %2, %3, %cst {dimension_numbers = #tpu.dot_dimension_numbers<[1], [0], [0], [1], [0, 0, 1, 1], [], []>} : vector<1x256xf32>, vector<256x256xf32>, vector<1x256xf32> -> vector<1x256xf32>
    %5 = vector.extract_strided_slice %4 {offsets = [0, 0], sizes = [1, 128], strides = [1, 1]} : vector<1x256xf32> to vector<1x128xf32>
    %c0_3 = arith.constant 0 : index
    %c0_4 = arith.constant 0 : index
    %6 = vector.load %arg2[%c0_3, %c0_4] : memref<8x256xf32, #tpu.memory_space<vmem>>, vector<1x128xf32>
    %7 = arith.addf %5, %6 : vector<1x128xf32>
    %8 = vector.extract_strided_slice %4 {offsets = [0, 128], sizes = [1, 128], strides = [1, 1]} : vector<1x256xf32> to vector<1x128xf32>
    %c0_5 = arith.constant 0 : index
    %c128 = arith.constant 128 : index
    %9 = vector.load %arg2[%c0_5, %c128] : memref<8x256xf32, #tpu.memory_space<vmem>>, vector<1x128xf32>
    %10 = arith.addf %8, %9 : vector<1x128xf32>
    %11 = math.rsqrt %10 : vector<1x128xf32>
    %12 = arith.mulf %10, %11 : vector<1x128xf32>
    %13 = arith.mulf %7, %11 : vector<1x128xf32>
    %cst_6 = arith.constant 1.59576917 : f32
    %14 = vector.broadcast %cst_6 : f32 to vector<1x128xf32>
    %15 = arith.mulf %14, %13 : vector<1x128xf32>
    %16 = arith.negf %15 : vector<1x128xf32>
    %17 = math.exp %16 : vector<1x128xf32>
    %cst_7 = arith.constant 1.000000e+00 : f32
    %18 = vector.broadcast %cst_7 : f32 to vector<1x128xf32>
    %19 = arith.addf %18, %17 : vector<1x128xf32>
    %20 = arith.divf %18, %19 : vector<1x128xf32>
    %cst_8 = arith.constant 0.398942292 : f32
    %21 = vector.broadcast %cst_8 : f32 to vector<1x128xf32>
    %22 = arith.mulf %12, %21 : vector<1x128xf32>
    %cst_9 = arith.constant -5.000000e-01 : f32
    %23 = vector.broadcast %cst_9 : f32 to vector<1x128xf32>
    %24 = arith.mulf %23, %13 : vector<1x128xf32>
    %25 = arith.mulf %24, %13 : vector<1x128xf32>
    %26 = math.exp %25 : vector<1x128xf32>
    %27 = arith.mulf %22, %26 : vector<1x128xf32>
    %28 = arith.mulf %20, %7 : vector<1x128xf32>
    %29 = arith.addf %28, %27 : vector<1x128xf32>
    %30 = arith.mulf %7, %7 : vector<1x128xf32>
    %31 = arith.addf %30, %10 : vector<1x128xf32>
    %32 = arith.mulf %20, %31 : vector<1x128xf32>
    %33 = arith.mulf %7, %27 : vector<1x128xf32>
    %34 = arith.addf %32, %33 : vector<1x128xf32>
    %35 = arith.mulf %29, %29 : vector<1x128xf32>
    %36 = arith.subf %34, %35 : vector<1x128xf32>
    %37 = arith.mulf %29, %29 : vector<1x128xf32>
    %38 = tpu.concatenate %29, %36, %37 in 1 : vector<1x128xf32>, vector<1x128xf32>, vector<1x128xf32> -> vector<1x384xf32>
    %c256 = arith.constant 256 : index
    %c0_10 = arith.constant 0 : index
    %39 = vector.load %arg1[%c256, %c0_10] : memref<1024x256xf32, #tpu.memory_space<vmem>>, vector<384x256xf32>
    %cst_11 = arith.constant dense<0.000000e+00> : vector<1x256xf32>
    %40 = tpu.matmul %38, %39, %cst_11 {dimension_numbers = #tpu.dot_dimension_numbers<[1], [0], [0], [1], [0, 0, 1, 1], [], []>} : vector<1x384xf32>, vector<384x256xf32>, vector<1x256xf32> -> vector<1x256xf32>
    %41 = vector.extract_strided_slice %40 {offsets = [0, 0], sizes = [1, 128], strides = [1, 1]} : vector<1x256xf32> to vector<1x128xf32>
    %c1 = arith.constant 1 : index
    %c0_12 = arith.constant 0 : index
    %42 = vector.load %arg2[%c1, %c0_12] : memref<8x256xf32, #tpu.memory_space<vmem>>, vector<1x128xf32>
    %43 = arith.addf %41, %42 : vector<1x128xf32>
    %44 = vector.extract_strided_slice %40 {offsets = [0, 128], sizes = [1, 128], strides = [1, 1]} : vector<1x256xf32> to vector<1x128xf32>
    %c1_13 = arith.constant 1 : index
    %c128_14 = arith.constant 128 : index
    %45 = vector.load %arg2[%c1_13, %c128_14] : memref<8x256xf32, #tpu.memory_space<vmem>>, vector<1x128xf32>
    %46 = arith.addf %44, %45 : vector<1x128xf32>
    %47 = math.rsqrt %46 : vector<1x128xf32>
    %48 = arith.mulf %46, %47 : vector<1x128xf32>
    %49 = arith.mulf %43, %47 : vector<1x128xf32>
    %cst_15 = arith.constant 1.59576917 : f32
    %50 = vector.broadcast %cst_15 : f32 to vector<1x128xf32>
    %51 = arith.mulf %50, %49 : vector<1x128xf32>
    %52 = arith.negf %51 : vector<1x128xf32>
    %53 = math.exp %52 : vector<1x128xf32>
    %cst_16 = arith.constant 1.000000e+00 : f32
    %54 = vector.broadcast %cst_16 : f32 to vector<1x128xf32>
    %55 = arith.addf %54, %53 : vector<1x128xf32>
    %56 = arith.divf %54, %55 : vector<1x128xf32>
    %cst_17 = arith.constant 0.398942292 : f32
    %57 = vector.broadcast %cst_17 : f32 to vector<1x128xf32>
    %58 = arith.mulf %48, %57 : vector<1x128xf32>
    %cst_18 = arith.constant -5.000000e-01 : f32
    %59 = vector.broadcast %cst_18 : f32 to vector<1x128xf32>
    %60 = arith.mulf %59, %49 : vector<1x128xf32>
    %61 = arith.mulf %60, %49 : vector<1x128xf32>
    %62 = math.exp %61 : vector<1x128xf32>
    %63 = arith.mulf %58, %62 : vector<1x128xf32>
    %64 = arith.mulf %56, %43 : vector<1x128xf32>
    %65 = arith.addf %64, %63 : vector<1x128xf32>
    %66 = arith.mulf %43, %43 : vector<1x128xf32>
    %67 = arith.addf %66, %46 : vector<1x128xf32>
    %68 = arith.mulf %56, %67 : vector<1x128xf32>
    %69 = arith.mulf %43, %63 : vector<1x128xf32>
    %70 = arith.addf %68, %69 : vector<1x128xf32>
    %71 = arith.mulf %65, %65 : vector<1x128xf32>
    %72 = arith.subf %70, %71 : vector<1x128xf32>
    %73 = arith.mulf %65, %65 : vector<1x128xf32>
    %74 = tpu.concatenate %65, %72, %73 in 1 : vector<1x128xf32>, vector<1x128xf32>, vector<1x128xf32> -> vector<1x384xf32>
    %c640 = arith.constant 640 : index
    %c0_19 = arith.constant 0 : index
    %75 = vector.load %arg1[%c640, %c0_19] : memref<1024x256xf32, #tpu.memory_space<vmem>>, vector<384x256xf32>
    %cst_20 = arith.constant dense<0.000000e+00> : vector<1x256xf32>
    %76 = tpu.matmul %74, %75, %cst_20 {dimension_numbers = #tpu.dot_dimension_numbers<[1], [0], [0], [1], [0, 0, 1, 1], [], []>} : vector<1x384xf32>, vector<384x256xf32>, vector<1x256xf32> -> vector<1x256xf32>
    %77 = vector.extract_strided_slice %76 {offsets = [0, 0], sizes = [1, 128], strides = [1, 1]} : vector<1x256xf32> to vector<1x128xf32>
    %c2 = arith.constant 2 : index
    %c0_21 = arith.constant 0 : index
    %78 = vector.load %arg2[%c2, %c0_21] : memref<8x256xf32, #tpu.memory_space<vmem>>, vector<1x128xf32>
    %79 = arith.addf %77, %78 : vector<1x128xf32>
    %80 = vector.extract_strided_slice %76 {offsets = [0, 128], sizes = [1, 128], strides = [1, 1]} : vector<1x256xf32> to vector<1x128xf32>
    %c2_22 = arith.constant 2 : index
    %c128_23 = arith.constant 128 : index
    %81 = vector.load %arg2[%c2_22, %c128_23] : memref<8x256xf32, #tpu.memory_space<vmem>>, vector<1x128xf32>
    %82 = arith.addf %80, %81 : vector<1x128xf32>
    %cst_24 = arith.constant 0.392699093 : f32
    %83 = vector.broadcast %cst_24 : f32 to vector<1x128xf32>
    %84 = arith.mulf %83, %82 : vector<1x128xf32>
    %cst_25 = arith.constant 1.000000e+00 : f32
    %85 = vector.broadcast %cst_25 : f32 to vector<1x128xf32>
    %86 = arith.addf %85, %84 : vector<1x128xf32>
    %87 = math.rsqrt %86 : vector<1x128xf32>
    %88 = arith.mulf %79, %87 : vector<1x128xf32>
    %89 = arith.negf %88 : vector<1x128xf32>
    %90 = math.exp %89 : vector<1x128xf32>
    %cst_26 = arith.constant 1.000000e+00 : f32
    %91 = vector.broadcast %cst_26 : f32 to vector<1x128xf32>
    %92 = arith.addf %91, %90 : vector<1x128xf32>
    %93 = arith.divf %91, %92 : vector<1x128xf32>
    %cst_27 = arith.constant -0.881373584 : f32
    %94 = vector.broadcast %cst_27 : f32 to vector<1x128xf32>
    %95 = arith.addf %79, %94 : vector<1x128xf32>
    %cst_28 = arith.constant 1.17157292 : f32
    %96 = vector.broadcast %cst_28 : f32 to vector<1x128xf32>
    %97 = arith.mulf %96, %95 : vector<1x128xf32>
    %cst_29 = arith.constant 0.539012074 : f32
    %98 = vector.broadcast %cst_29 : f32 to vector<1x128xf32>
    %99 = arith.mulf %98, %82 : vector<1x128xf32>
    %cst_30 = arith.constant 1.000000e+00 : f32
    %100 = vector.broadcast %cst_30 : f32 to vector<1x128xf32>
    %101 = arith.addf %100, %99 : vector<1x128xf32>
    %102 = math.rsqrt %101 : vector<1x128xf32>
    %103 = arith.mulf %97, %102 : vector<1x128xf32>
    %104 = arith.negf %103 : vector<1x128xf32>
    %105 = math.exp %104 : vector<1x128xf32>
    %cst_31 = arith.constant 1.000000e+00 : f32
    %106 = vector.broadcast %cst_31 : f32 to vector<1x128xf32>
    %107 = arith.addf %106, %105 : vector<1x128xf32>
    %108 = arith.divf %106, %107 : vector<1x128xf32>
    %109 = arith.mulf %93, %93 : vector<1x128xf32>
    %110 = arith.subf %108, %109 : vector<1x128xf32>
    %111 = tpu.concatenate %93, %110 in 1 : vector<1x128xf32>, vector<1x128xf32> -> vector<1x256xf32>
    %c0_32 = arith.constant 0 : index
    %c0_33 = arith.constant 0 : index
    %112 = vector.load %arg3[%c0_32, %c0_33] : memref<1x256xf32, #tpu.memory_space<vmem>>, vector<1x256xf32>
    tpu.vector_store %arg3[%c0_32, %c0_33], %111 {strides = array<i32>} : memref<1x256xf32, #tpu.memory_space<vmem>>, vector<1x256xf32>,
    return
  }
}

</mosaic_0001>

<llo_original>
// kernel: gosh_forward.1
$region0: #{gosh_forward.1}
  #allocation0 [shape = 'u32[]', space=smem, size = 0x4, offset = 0x4, fixed_abs, tag = 'smem constant byte address 0x4 - core index']
  #allocation1 [shape = 'u32[144,128]{1,0:T(1,128)}', space=vmem, size = 0x12000, scoped, tag = 'internal scratch']
  %s0 = inlined_call_operand.vmem [shape: f32[1,128], index: 0, kind: input, shape index: {}]
  %s1 = inlined_call_operand.hbm [shape: f32[1024,256], index: 1, kind: input, shape index: {}]
  %s2 = inlined_call_operand.vmem [shape: f32[8,256], index: 2, kind: input, shape index: {}]
  %s3 = inlined_call_operand.vmem [shape: f32[1,256], index: 3, kind: output, shape index: {}]
  %s4 = sld [smem:[#allocation0]]
  $region26: #{gosh_forward.1} parent=0
    _
  %s6 = ssub.s32 1, %s4
  %s7 = scalar_select 0, %s6, %s4
  $region1: #{gosh_forward.1} parent=0
    #allocation2 [shape = 'u8[1048576]{0}', space=vmem, size = 0x100000, scoped, tag = 'input window, operand 1, single buffered']
    #allocation3 [shape = 's32[1]{0}', space=sflag, size = 0x4, scoped, tag = 'scoped memory for gosh_forward.1']
    %8 = vsyncpa [#allocation3], 0
    // Predicated region
    $region2: #{gosh_forward.1} parent=1 // pred_check
      _
    $region3: #{gosh_forward.1} parent=1 // pred_check_branch
      %10 = sbr.rel (0) target = $region5
    $region4: #{gosh_forward.1} parent=1 // pred_region
      _
    $region5: #{gosh_forward.1} parent=1 // pred_fallthru
      _
    // Predicated region
    $region6: #{gosh_forward.1} parent=1 // pred_check
      _
    $region7: #{gosh_forward.1} parent=1 // pred_check_branch
      %12 = sbr.rel (0) target = $region9
    $region8: #{gosh_forward.1} parent=1 // pred_region
      %s14 = ssub.s32 32768, 32768
      %15 = vsyncadd [#allocation3], %s14
      %s16 = sshll.u32 [#allocation2], 4
      %s17 = int_to_ptr.vmem [resolvable:$true] %s16
      %22 = dma.hbm_to_vmem [thread:$0]  %s1, 32768, %s17, [#allocation3], 256, 256, 16
    $region9: #{gosh_forward.1} parent=1 // pred_fallthru
      _
    // Predicated region
    $region10: #{gosh_forward.1} parent=1 // pred_check
      _
    $region11: #{gosh_forward.1} parent=1 // pred_check_branch
      %24 = sbr.rel (0) target = $region13
    $region12: #{gosh_forward.1} parent=1 // pred_region
      _
    $region13: #{gosh_forward.1} parent=1 // pred_fallthru
      _
    // Predicated region
    $region14: #{gosh_forward.1} parent=1 // pred_check
      _
    $region15: #{gosh_forward.1} parent=1 // pred_check_branch
      %26 = sbr.rel (0) target = $region17
    $region16: #{gosh_forward.1} parent=1 // pred_region
      %27 = dma.done [#allocation3], 32768
    $region17: #{gosh_forward.1} parent=1 // pred_fallthru
      _
    %v28 = vld [vmem:[%s0] sm:$0x1]
    %v29 = vmul.f32 %v28, %v28
    %v30 = vld [vmem:[#allocation2] sm:$0xff]
    %v31 = vld [vmem:[#allocation2 + $0x8] sm:$0xff]
    %v32 = vld [vmem:[#allocation2 + $0x10] sm:$0xff]
    %v33 = vld [vmem:[#allocation2 + $0x18] sm:$0xff]
    %v34 = vld [vmem:[#allocation2 + $0x20] sm:$0xff]
    %v35 = vld [vmem:[#allocation2 + $0x28] sm:$0xff]
    %v36 = vld [vmem:[#allocation2 + $0x30] sm:$0xff]
    %v37 = vld [vmem:[#allocation2 + $0x38] sm:$0xff]
    %v38 = vld [vmem:[#allocation2 + $0x40] sm:$0xff]
    %v39 = vld [vmem:[#allocation2 + $0x48] sm:$0xff]
    %v40 = vld [vmem:[#allocation2 + $0x50] sm:$0xff]
    %v41 = vld [vmem:[#allocation2 + $0x58] sm:$0xff]
    %v42 = vld [vmem:[#allocation2 + $0x60] sm:$0xff]
    %v43 = vld [vmem:[#allocation2 + $0x68] sm:$0xff]
    %v44 = vld [vmem:[#allocation2 + $0x70] sm:$0xff]
    %v45 = vld [vmem:[#allocation2 + $0x78] sm:$0xff]
    %v46 = vld [vmem:[#allocation2 + $0x80] sm:$0xff]
    %v47 = vld [vmem:[#allocation2 + $0x88] sm:$0xff]
    %v48 = vld [vmem:[#allocation2 + $0x90] sm:$0xff]
    %v49 = vld [vmem:[#allocation2 + $0x98] sm:$0xff]
    %v50 = vld [vmem:[#allocation2 + $0xa0] sm:$0xff]
    %v51 = vld [vmem:[#allocation2 + $0xa8] sm:$0xff]
    %v52 = vld [vmem:[#allocation2 + $0xb0] sm:$0xff]
    %v53 = vld [vmem:[#allocation2 + $0xb8] sm:$0xff]
    %v54 = vld [vmem:[#allocation2 + $0xc0] sm:$0xff]
    %v55 = vld [vmem:[#allocation2 + $0xc8] sm:$0xff]
    %v56 = vld [vmem:[#allocation2 + $0xd0] sm:$0xff]
    %v57 = vld [vmem:[#allocation2 + $0xd8] sm:$0xff]
    %v58 = vld [vmem:[#allocation2 + $0xe0] sm:$0xff]
    %v59 = vld [vmem:[#allocation2 + $0xe8] sm:$0xff]
    %v60 = vld [vmem:[#allocation2 + $0xf0] sm:$0xff]
    %v61 = vld [vmem:[#allocation2 + $0xf8] sm:$0xff]
    %v62 = vld [vmem:[#allocation2 + $0x100] sm:$0xff]
    %v63 = vld [vmem:[#allocation2 + $0x108] sm:$0xff]
    %v64 = vld [vmem:[#allocation2 + $0x110] sm:$0xff]
    %v65 = vld [vmem:[#allocation2 + $0x118] sm:$0xff]
    %v66 = vld [vmem:[#allocation2 + $0x120] sm:$0xff]
    %v67 = vld [vmem:[#allocation2 + $0x128] sm:$0xff]
    %v68 = vld [vmem:[#allocation2 + $0x130] sm:$0xff]
    %v69 = vld [vmem:[#allocation2 + $0x138] sm:$0xff]
    %v70 = vld [vmem:[#allocation2 + $0x140] sm:$0xff]
    %v71 = vld [vmem:[#allocation2 + $0x148] sm:$0xff]
    %v72 = vld [vmem:[#allocation2 + $0x150] sm:$0xff]
    %v73 = vld [vmem:[#allocation2 + $0x158] sm:$0xff]
    %v74 = vld [vmem:[#allocation2 + $0x160] sm:$0xff]
    %v75 = vld [vmem:[#allocation2 + $0x168] sm:$0xff]
    %v76 = vld [vmem:[#allocation2 + $0x170] sm:$0xff]
    %v77 = vld [vmem:[#allocation2 + $0x178] sm:$0xff]
    %v78 = vld [vmem:[#allocation2 + $0x180] sm:$0xff]
    %v79 = vld [vmem:[#allocation2 + $0x188] sm:$0xff]
    %v80 = vld [vmem:[#allocation2 + $0x190] sm:$0xff]
    %v81 = vld [vmem:[#allocation2 + $0x198] sm:$0xff]
    %v82 = vld [vmem:[#allocation2 + $0x1a0] sm:$0xff]
    %v83 = vld [vmem:[#allocation2 + $0x1a8] sm:$0xff]
    %v84 = vld [vmem:[#allocation2 + $0x1b0] sm:$0xff]
    %v85 = vld [vmem:[#allocation2 + $0x1b8] sm:$0xff]
    %v86 = vld [vmem:[#allocation2 + $0x1c0] sm:$0xff]
    %v87 = vld [vmem:[#allocation2 + $0x1c8] sm:$0xff]
    %v88 = vld [vmem:[#allocation2 + $0x1d0] sm:$0xff]
    %v89 = vld [vmem:[#allocation2 + $0x1d8] sm:$0xff]
    %v90 = vld [vmem:[#allocation2 + $0x1e0] sm:$0xff]
    %v91 = vld [vmem:[#allocation2 + $0x1e8] sm:$0xff]
    %v92 = vld [vmem:[#allocation2 + $0x1f0] sm:$0xff]
    %v93 = vld [vmem:[#allocation2 + $0x1f8] sm:$0xff]
    %94 = vmatprep.subr.mxu0 %v61
    %95 = vmatpush1.msra.mxu0 %v60
    %96 = vmatprep.subr.mxu0 %v59
    %97 = vmatpush1.msra.mxu0 %v58
    %98 = vmatprep.subr.mxu0 %v57
    %99 = vmatpush1.msra.mxu0 %v56
    %100 = vmatprep.subr.mxu0 %v55
    %101 = vmatpush1.msra.mxu0 %v54
    %102 = vmatprep.subr.mxu0 %v53
    %103 = vmatpush1.msra.mxu0 %v52
    %104 = vmatprep.subr.mxu0 %v51
    %105 = vmatpush1.msra.mxu0 %v50
    %106 = vmatprep.subr.mxu0 %v49
    %107 = vmatpush1.msra.mxu0 %v48
    %108 = vmatprep.subr.mxu0 %v47
    %109 = vmatpush1.msra.mxu0 %v46
    %110 = vmatprep.subr.mxu0 %v45
    %111 = vmatpush1.msra.mxu0 %v44
    %112 = vmatprep.subr.mxu0 %v43
    %113 = vmatpush1.msra.mxu0 %v42
    %114 = vmatprep.subr.mxu0 %v41
    %115 = vmatpush1.msra.mxu0 %v40
    %116 = vmatprep.subr.mxu0 %v39
    %117 = vmatpush1.msra.mxu0 %v38
    %118 = vmatprep.subr.mxu0 %v37
    %119 = vmatpush1.msra.mxu0 %v36
    %120 = vmatprep.subr.mxu0 %v35
    %121 = vmatpush1.msra.mxu0 %v34
    %122 = vmatprep.subr.mxu0 %v33
    %123 = vmatpush1.msra.mxu0 %v32
    %124 = vmatprep.subr.mxu0 %v31
    %125 = vmatpush1.msra.mxu0 %v30
    %126 = vmatprep.subr.mxu0 %v93
    %127 = vmatpush2.msra.mxu0 %v92
    %128 = vmatprep.subr.mxu0 %v91
    %129 = vmatpush2.msra.mxu0 %v90
    %130 = vmatprep.subr.mxu0 %v89
    %131 = vmatpush2.msra.mxu0 %v88
    %132 = vmatprep.subr.mxu0 %v87
    %133 = vmatpush2.msra.mxu0 %v86
    %134 = vmatprep.subr.mxu0 %v85
    %135 = vmatpush2.msra.mxu0 %v84
    %136 = vmatprep.subr.mxu0 %v83
    %137 = vmatpush2.msra.mxu0 %v82
    %138 = vmatprep.subr.mxu0 %v81
    %139 = vmatpush2.msra.mxu0 %v80
    %140 = vmatprep.subr.mxu0 %v79
    %141 = vmatpush2.msra.mxu0 %v78
    %142 = vmatprep.subr.mxu0 %v77
    %143 = vmatpush2.msra.mxu0 %v76
    %144 = vmatprep.subr.mxu0 %v75
    %145 = vmatpush2.msra.mxu0 %v74
    %146 = vmatprep.subr.mxu0 %v73
    %147 = vmatpush2.msra.mxu0 %v72
    %148 = vmatprep.subr.mxu0 %v71
    %149 = vmatpush2.msra.mxu0 %v70
    %150 = vmatprep.subr.mxu0 %v69
    %151 = vmatpush2.msra.mxu0 %v68
    %152 = vmatprep.subr.mxu0 %v67
    %153 = vmatpush2.msra.mxu0 %v66
    %154 = vmatprep.subr.mxu0 %v65
    %155 = vmatpush2.msra.mxu0 %v64
    %156 = vmatprep.subr.mxu0 %v63
    %157 = vmatpush2.msra.mxu0 %v62
    %158 = vmatprep.mubr.f32.mxu0 %v29
    %159 = vmatmul.mubr.f32.gmra.mxu0 %v28
    %v160 = vpop.f32.mrf.mxu0
    %v161 = vadd.f32 0.0, %v160
    %v162 = vpop.f32.mrf.mxu0
    %v163 = vadd.f32 0.0, %v162
    %164 = vdwg.mxu0
    %v165 = vld [vmem:[%s2] ss:$0 sm:$0xff]
    %v166 = vadd.f32 %v161, %v165
    %v167 = vld [vmem:[%s2 + $0x8] ss:$0 sm:$0xff]
    %v168 = vadd.f32 %v163, %v167
    %v169 = vrsqrt.pop %v168
    %v170 = vmul.f32 %v168, %v169
    %v171 = vmul.f32 %v166, %v169
    %v172 = vmul.f32 %v171, 1.5957692
    %v173 = vxor.u32 %v172, 2147483648
    %v174 = vmul.f32 %v173, 1.442695
    %v175 = vpow.pop %v174
    %v176 = vadd.f32 %v175, 1.0
    %v177 = vrcp.pop %v176
    %v178 = vmul.f32 1.0, %v177
    %v179 = vmul.f32 %v170, 0.3989423
    %v180 = vmul.f32 %v171, -0.5
    %v181 = vmul.f32 %v180, %v171
    %v182 = vmul.f32 %v181, 1.442695
    %v183 = vpow.pop %v182
    %v184 = vmul.f32 %v179, %v183
    %v185 = vmul.f32 %v178, %v166
    %v186 = vadd.f32 %v185, %v184
    %v187 = vmul.f32 %v166, %v166
    %v188 = vadd.f32 %v187, %v168
    %v189 = vmul.f32 %v178, %v188
    %v190 = vmul.f32 %v166, %v184
    %v191 = vadd.f32 %v189, %v190
    %v192 = vmul.f32 %v186, %v186
    %v193 = vsub.f32 %v191, %v192
    %v194 = vld [vmem:[#allocation2 + $0x200] sm:$0xff]
    %v195 = vld [vmem:[#allocation2 + $0x208] sm:$0xff]
    %v196 = vld [vmem:[#allocation2 + $0x210] sm:$0xff]
    %v197 = vld [vmem:[#allocation2 + $0x218] sm:$0xff]
    %v198 = vld [vmem:[#allocation2 + $0x220] sm:$0xff]
    %v199 = vld [vmem:[#allocation2 + $0x228] sm:$0xff]
    %v200 = vld [vmem:[#allocation2 + $0x230] sm:$0xff]
    %v201 = vld [vmem:[#allocation2 + $0x238] sm:$0xff]
    %v202 = vld [vmem:[#allocation2 + $0x240] sm:$0xff]
    %v203 = vld [vmem:[#allocation2 + $0x248] sm:$0xff]
    %v204 = vld [vmem:[#allocation2 + $0x250] sm:$0xff]
    %v205 = vld [vmem:[#allocation2 + $0x258] sm:$0xff]
    %v206 = vld [vmem:[#allocation2 + $0x260] sm:$0xff]
    %v207 = vld [vmem:[#allocation2 + $0x268] sm:$0xff]
    %v208 = vld [vmem:[#allocation2 + $0x270] sm:$0xff]
    %v209 = vld [vmem:[#allocation2 + $0x278] sm:$0xff]
    %v210 = vld [vmem:[#allocation2 + $0x280] sm:$0xff]
    %v211 = vld [vmem:[#allocation2 + $0x288] sm:$0xff]
    %v212 = vld [vmem:[#allocation2 + $0x290] sm:$0xff]
    %v213 = vld [vmem:[#allocation2 + $0x298] sm:$0xff]
    %v214 = vld [vmem:[#allocation2 + $0x2a0] sm:$0xff]
    %v215 = vld [vmem:[#allocation2 + $0x2a8] sm:$0xff]
    %v216 = vld [vmem:[#allocation2 + $0x2b0] sm:$0xff]
    %v217 = vld [vmem:[#allocation2 + $0x2b8] sm:$0xff]
    %v218 = vld [vmem:[#allocation2 + $0x2c0] sm:$0xff]
    %v219 = vld [vmem:[#allocation2 + $0x2c8] sm:$0xff]
    %v220 = vld [vmem:[#allocation2 + $0x2d0] sm:$0xff]
    %v221 = vld [vmem:[#allocation2 + $0x2d8] sm:$0xff]
    %v222 = vld [vmem:[#allocation2 + $0x2e0] sm:$0xff]
    %v223 = vld [vmem:[#allocation2 + $0x2e8] sm:$0xff]
    %v224 = vld [vmem:[#allocation2 + $0x2f0] sm:$0xff]
    %v225 = vld [vmem:[#allocation2 + $0x2f8] sm:$0xff]
    %v226 = vld [vmem:[#allocation2 + $0x300] sm:$0xff]
    %v227 = vld [vmem:[#allocation2 + $0x308] sm:$0xff]
    %v228 = vld [vmem:[#allocation2 + $0x310] sm:$0xff]
    %v229 = vld [vmem:[#allocation2 + $0x318] sm:$0xff]
    %v230 = vld [vmem:[#allocation2 + $0x320] sm:$0xff]
    %v231 = vld [vmem:[#allocation2 + $0x328] sm:$0xff]
    %v232 = vld [vmem:[#allocation2 + $0x330] sm:$0xff]
    %v233 = vld [vmem:[#allocation2 + $0x338] sm:$0xff]
    %v234 = vld [vmem:[#allocation2 + $0x340] sm:$0xff]
    %v235 = vld [vmem:[#allocation2 + $0x348] sm:$0xff]
    %v236 = vld [vmem:[#allocation2 + $0x350] sm:$0xff]
    %v237 = vld [vmem:[#allocation2 + $0x358] sm:$0xff]
    %v238 = vld [vmem:[#allocation2 + $0x360] sm:$0xff]
    %v239 = vld [vmem:[#allocation2 + $0x368] sm:$0xff]
    %v240 = vld [vmem:[#allocation2 + $0x370] sm:$0xff]
    %v241 = vld [vmem:[#allocation2 + $0x378] sm:$0xff]
    %v242 = vld [vmem:[#allocation2 + $0x380] sm:$0xff]
    %v243 = vld [vmem:[#allocation2 + $0x388] sm:$0xff]
    %v244 = vld [vmem:[#allocation2 + $0x390] sm:$0xff]
    %v245 = vld [vmem:[#allocation2 + $0x398] sm:$0xff]
    %v246 = vld [vmem:[#allocation2 + $0x3a0] sm:$0xff]
    %v247 = vld [vmem:[#allocation2 + $0x3a8] sm:$0xff]
    %v248 = vld [vmem:[#allocation2 + $0x3b0] sm:$0xff]
    %v249 = vld [vmem:[#allocation2 + $0x3b8] sm:$0xff]
    %v250 = vld [vmem:[#allocation2 + $0x3c0] sm:$0xff]
    %v251 = vld [vmem:[#allocation2 + $0x3c8] sm:$0xff]
    %v252 = vld [vmem:[#allocation2 + $0x3d0] sm:$0xff]
    %v253 = vld [vmem:[#allocation2 + $0x3d8] sm:$0xff]
    %v254 = vld [vmem:[#allocation2 + $0x3e0] sm:$0xff]
    %v255 = vld [vmem:[#allocation2 + $0x3e8] sm:$0xff]
    %v256 = vld [vmem:[#allocation2 + $0x3f0] sm:$0xff]
    %v257 = vld [vmem:[#allocation2 + $0x3f8] sm:$0xff]
    %v258 = vld [vmem:[#allocation2 + $0x400] sm:$0xff]
    %v259 = vld [vmem:[#allocation2 + $0x408] sm:$0xff]
    %v260 = vld [vmem:[#allocation2 + $0x410] sm:$0xff]
    %v261 = vld [vmem:[#allocation2 + $0x418] sm:$0xff]
    %v262 = vld [vmem:[#allocation2 + $0x420] sm:$0xff]
    %v263 = vld [vmem:[#allocation2 + $0x428] sm:$0xff]
    %v264 = vld [vmem:[#allocation2 + $0x430] sm:$0xff]
    %v265 = vld [vmem:[#allocation2 + $0x438] sm:$0xff]
    %v266 = vld [vmem:[#allocation2 + $0x440] sm:$0xff]
    %v267 = vld [vmem:[#allocation2 + $0x448] sm:$0xff]
    %v268 = vld [vmem:[#allocation2 + $0x450] sm:$0xff]
    %v269 = vld [vmem:[#allocation2 + $0x458] sm:$0xff]
    %v270 = vld [vmem:[#allocation2 + $0x460] sm:$0xff]
    %v271 = vld [vmem:[#allocation2 + $0x468] sm:$0xff]
    %v272 = vld [vmem:[#allocation2 + $0x470] sm:$0xff]
    %v273 = vld [vmem:[#allocation2 + $0x478] sm:$0xff]
    %v274 = vld [vmem:[#allocation2 + $0x480] sm:$0xff]
    %v275 = vld [vmem:[#allocation2 + $0x488] sm:$0xff]
    %v276 = vld [vmem:[#allocation2 + $0x490] sm:$0xff]
    %v277 = vld [vmem:[#allocation2 + $0x498] sm:$0xff]
    %v278 = vld [vmem:[#allocation2 + $0x4a0] sm:$0xff]
    %v279 = vld [vmem:[#allocation2 + $0x4a8] sm:$0xff]
    %v280 = vld [vmem:[#allocation2 + $0x4b0] sm:$0xff]
    %v281 = vld [vmem:[#allocation2 + $0x4b8] sm:$0xff]
    %v282 = vld [vmem:[#allocation2 + $0x4c0] sm:$0xff]
    %v283 = vld [vmem:[#allocation2 + $0x4c8] sm:$0xff]
    %v284 = vld [vmem:[#allocation2 + $0x4d0] sm:$0xff]
    %v285 = vld [vmem:[#allocation2 + $0x4d8] sm:$0xff]
    %v286 = vld [vmem:[#allocation2 + $0x4e0] sm:$0xff]
    %v287 = vld [vmem:[#allocation2 + $0x4e8] sm:$0xff]
    %v288 = vld [vmem:[#allocation2 + $0x4f0] sm:$0xff]
    %v289 = vld [vmem:[#allocation2 + $0x4f8] sm:$0xff]
    %290 = vmatprep.subr.mxu0 %v225
    %291 = vmatpush1.msra.mxu0 %v224
    %292 = vmatprep.subr.mxu0 %v223
    %293 = vmatpush1.msra.mxu0 %v222
    %294 = vmatprep.subr.mxu0 %v221
    %295 = vmatpush1.msra.mxu0 %v220
    %296 = vmatprep.subr.mxu0 %v219
    %297 = vmatpush1.msra.mxu0 %v218
    %298 = vmatprep.subr.mxu0 %v217
    %299 = vmatpush1.msra.mxu0 %v216
    %300 = vmatprep.subr.mxu0 %v215
    %301 = vmatpush1.msra.mxu0 %v214
    %302 = vmatprep.subr.mxu0 %v213
    %303 = vmatpush1.msra.mxu0 %v212
    %304 = vmatprep.subr.mxu0 %v211
    %305 = vmatpush1.msra.mxu0 %v210
    %306 = vmatprep.subr.mxu0 %v209
    %307 = vmatpush1.msra.mxu0 %v208
    %308 = vmatprep.subr.mxu0 %v207
    %309 = vmatpush1.msra.mxu0 %v206
    %310 = vmatprep.subr.mxu0 %v205
    %311 = vmatpush1.msra.mxu0 %v204
    %312 = vmatprep.subr.mxu0 %v203
    %313 = vmatpush1.msra.mxu0 %v202
    %314 = vmatprep.subr.mxu0 %v201
    %315 = vmatpush1.msra.mxu0 %v200
    %316 = vmatprep.subr.mxu0 %v199
    %317 = vmatpush1.msra.mxu0 %v198
    %318 = vmatprep.subr.mxu0 %v197
    %319 = vmatpush1.msra.mxu0 %v196
    %320 = vmatprep.subr.mxu0 %v195
    %321 = vmatpush1.msra.mxu0 %v194
    %322 = vmatprep.subr.mxu0 %v257
    %323 = vmatpush2.msra.mxu0 %v256
    %324 = vmatprep.subr.mxu0 %v255
    %325 = vmatpush2.msra.mxu0 %v254
    %326 = vmatprep.subr.mxu0 %v253
    %327 = vmatpush2.msra.mxu0 %v252
    %328 = vmatprep.subr.mxu0 %v251
    %329 = vmatpush2.msra.mxu0 %v250
    %330 = vmatprep.subr.mxu0 %v249
    %331 = vmatpush2.msra.mxu0 %v248
    %332 = vmatprep.subr.mxu0 %v247
    %333 = vmatpush2.msra.mxu0 %v246
    %334 = vmatprep.subr.mxu0 %v245
    %335 = vmatpush2.msra.mxu0 %v244
    %336 = vmatprep.subr.mxu0 %v243
    %337 = vmatpush2.msra.mxu0 %v242
    %338 = vmatprep.subr.mxu0 %v241
    %339 = vmatpush2.msra.mxu0 %v240
    %340 = vmatprep.subr.mxu0 %v239
    %341 = vmatpush2.msra.mxu0 %v238
    %342 = vmatprep.subr.mxu0 %v237
    %343 = vmatpush2.msra.mxu0 %v236
    %344 = vmatprep.subr.mxu0 %v235
    %345 = vmatpush2.msra.mxu0 %v234
    %346 = vmatprep.subr.mxu0 %v233
    %347 = vmatpush2.msra.mxu0 %v232
    %348 = vmatprep.subr.mxu0 %v231
    %349 = vmatpush2.msra.mxu0 %v230
    %350 = vmatprep.subr.mxu0 %v229
    %351 = vmatpush2.msra.mxu0 %v228
    %352 = vmatprep.subr.mxu0 %v227
    %353 = vmatpush2.msra.mxu0 %v226
    %354 = vmatprep.mubr.f32.mxu0 %v193
    %355 = vmatmul.mubr.f32.gmra.mxu0 %v186
    %v356 = vpop.f32.mrf.mxu0
    %v357 = vadd.f32 0.0, %v356
    %v358 = vpop.f32.mrf.mxu0
    %v359 = vadd.f32 0.0, %v358
    %360 = vdwg.mxu0
    %361 = vmatprep.subr.mxu0 %v289
    %362 = vmatpush1.msra.mxu0 %v288
    %363 = vmatprep.subr.mxu0 %v287
    %364 = vmatpush1.msra.mxu0 %v286
    %365 = vmatprep.subr.mxu0 %v285
    %366 = vmatpush1.msra.mxu0 %v284
    %367 = vmatprep.subr.mxu0 %v283
    %368 = vmatpush1.msra.mxu0 %v282
    %369 = vmatprep.subr.mxu0 %v281
    %370 = vmatpush1.msra.mxu0 %v280
    %371 = vmatprep.subr.mxu0 %v279
    %372 = vmatpush1.msra.mxu0 %v278
    %373 = vmatprep.subr.mxu0 %v277
    %374 = vmatpush1.msra.mxu0 %v276
    %375 = vmatprep.subr.mxu0 %v275
    %376 = vmatpush1.msra.mxu0 %v274
    %377 = vmatprep.subr.mxu0 %v273
    %378 = vmatpush1.msra.mxu0 %v272
    %379 = vmatprep.subr.mxu0 %v271
    %380 = vmatpush1.msra.mxu0 %v270
    %381 = vmatprep.subr.mxu0 %v269
    %382 = vmatpush1.msra.mxu0 %v268
    %383 = vmatprep.subr.mxu0 %v267
    %384 = vmatpush1.msra.mxu0 %v266
    %385 = vmatprep.subr.mxu0 %v265
    %386 = vmatpush1.msra.mxu0 %v264
    %387 = vmatprep.subr.mxu0 %v263
    %388 = vmatpush1.msra.mxu0 %v262
    %389 = vmatprep.subr.mxu0 %v261
    %390 = vmatpush1.msra.mxu0 %v260
    %391 = vmatprep.subr.mxu0 %v259
    %392 = vmatpush1.msra.mxu0 %v258
    %393 = vmatprep.subr.mxu0 0.0
    %394 = vmatpush2.msra.mxu0 0.0
    %395 = vmatprep.subr.mxu0 0.0
    %396 = vmatpush2.msra.mxu0 0.0
    %397 = vmatprep.subr.mxu0 0.0
    %398 = vmatpush2.msra.mxu0 0.0
    %399 = vmatprep.subr.mxu0 0.0
    %400 = vmatpush2.msra.mxu0 0.0
    %401 = vmatprep.subr.mxu0 0.0
    %402 = vmatpush2.msra.mxu0 0.0
    %403 = vmatprep.subr.mxu0 0.0
    %404 = vmatpush2.msra.mxu0 0.0
    %405 = vmatprep.subr.mxu0 0.0
    %406 = vmatpush2.msra.mxu0 0.0
    %407 = vmatprep.subr.mxu0 0.0
    %408 = vmatpush2.msra.mxu0 0.0
    %409 = vmatprep.subr.mxu0 0.0
    %410 = vmatpush2.msra.mxu0 0.0
    %411 = vmatprep.subr.mxu0 0.0
    %412 = vmatpush2.msra.mxu0 0.0
    %413 = vmatprep.subr.mxu0 0.0
    %414 = vmatpush2.msra.mxu0 0.0
    %415 = vmatprep.subr.mxu0 0.0
    %416 = vmatpush2.msra.mxu0 0.0
    %417 = vmatprep.subr.mxu0 0.0
    %418 = vmatpush2.msra.mxu0 0.0
    %419 = vmatprep.subr.mxu0 0.0
    %420 = vmatpush2.msra.mxu0 0.0
    %421 = vmatprep.subr.mxu0 0.0
    %422 = vmatpush2.msra.mxu0 0.0
    %423 = vmatprep.subr.mxu0 0.0
    %424 = vmatpush2.msra.mxu0 0.0
    %425 = vmatprep.mubr.f32.mxu0 0.0
    %426 = vmatmul.mubr.f32.gmra.mxu0 %v192
    %v427 = vpop.f32.mrf.mxu0
    %v428 = vadd.f32 %v357, %v427
    %v429 = vpop.f32.mrf.mxu0
    %v430 = vadd.f32 %v359, %v429
    %431 = vdwg.mxu0
    %v432 = vld [vmem:[%s2 + $0x1] ss:$0 sm:$0xff]
    %v433 = vadd.f32 %v428, %v432
    %v434 = vld [vmem:[%s2 + $0x9] ss:$0 sm:$0xff]
    %v435 = vadd.f32 %v430, %v434
    %v436 = vrsqrt.pop %v435
    %v437 = vmul.f32 %v435, %v436
    %v438 = vmul.f32 %v433, %v436
    %v439 = vmul.f32 %v438, 1.5957692
    %v440 = vxor.u32 %v439, 2147483648
    %v441 = vmul.f32 %v440, 1.442695
    %v442 = vpow.pop %v441
    %v443 = vadd.f32 %v442, 1.0
    %v444 = vrcp.pop %v443
    %v445 = vmul.f32 1.0, %v444
    %v446 = vmul.f32 %v437, 0.3989423
    %v447 = vmul.f32 %v438, -0.5
    %v448 = vmul.f32 %v447, %v438
    %v449 = vmul.f32 %v448, 1.442695
    %v450 = vpow.pop %v449
    %v451 = vmul.f32 %v446, %v450
    %v452 = vmul.f32 %v445, %v433
    %v453 = vadd.f32 %v452, %v451
    %v454 = vmul.f32 %v433, %v433
    %v455 = vadd.f32 %v454, %v435
    %v456 = vmul.f32 %v445, %v455
    %v457 = vmul.f32 %v433, %v451
    %v458 = vadd.f32 %v456, %v457
    %v459 = vmul.f32 %v453, %v453
    %v460 = vsub.f32 %v458, %v459
    %v461 = vld [vmem:[#allocation2 + $0x500] sm:$0xff]
    %v462 = vld [vmem:[#allocation2 + $0x508] sm:$0xff]
    %v463 = vld [vmem:[#allocation2 + $0x510] sm:$0xff]
    %v464 = vld [vmem:[#allocation2 + $0x518] sm:$0xff]
    %v465 = vld [vmem:[#allocation2 + $0x520] sm:$0xff]
    %v466 = vld [vmem:[#allocation2 + $0x528] sm:$0xff]
    %v467 = vld [vmem:[#allocation2 + $0x530] sm:$0xff]
    %v468 = vld [vmem:[#allocation2 + $0x538] sm:$0xff]
    %v469 = vld [vmem:[#allocation2 + $0x540] sm:$0xff]
    %v470 = vld [vmem:[#allocation2 + $0x548] sm:$0xff]
    %v471 = vld [vmem:[#allocation2 + $0x550] sm:$0xff]
    %v472 = vld [vmem:[#allocation2 + $0x558] sm:$0xff]
    %v473 = vld [vmem:[#allocation2 + $0x560] sm:$0xff]
    %v474 = vld [vmem:[#allocation2 + $0x568] sm:$0xff]
    %v475 = vld [vmem:[#allocation2 + $0x570] sm:$0xff]
    %v476 = vld [vmem:[#allocation2 + $0x578] sm:$0xff]
    %v477 = vld [vmem:[#allocation2 + $0x580] sm:$0xff]
    %v478 = vld [vmem:[#allocation2 + $0x588] sm:$0xff]
    %v479 = vld [vmem:[#allocation2 + $0x590] sm:$0xff]
    %v480 = vld [vmem:[#allocation2 + $0x598] sm:$0xff]
    %v481 = vld [vmem:[#allocation2 + $0x5a0] sm:$0xff]
    %v482 = vld [vmem:[#allocation2 + $0x5a8] sm:$0xff]
    %v483 = vld [vmem:[#allocation2 + $0x5b0] sm:$0xff]
    %v484 = vld [vmem:[#allocation2 + $0x5b8] sm:$0xff]
    %v485 = vld [vmem:[#allocation2 + $0x5c0] sm:$0xff]
    %v486 = vld [vmem:[#allocation2 + $0x5c8] sm:$0xff]
    %v487 = vld [vmem:[#allocation2 + $0x5d0] sm:$0xff]
    %v488 = vld [vmem:[#allocation2 + $0x5d8] sm:$0xff]
    %v489 = vld [vmem:[#allocation2 + $0x5e0] sm:$0xff]
    %v490 = vld [vmem:[#allocation2 + $0x5e8] sm:$0xff]
    %v491 = vld [vmem:[#allocation2 + $0x5f0] sm:$0xff]
    %v492 = vld [vmem:[#allocation2 + $0x5f8] sm:$0xff]
    %v493 = vld [vmem:[#allocation2 + $0x600] sm:$0xff]
    %v494 = vld [vmem:[#allocation2 + $0x608] sm:$0xff]
    %v495 = vld [vmem:[#allocation2 + $0x610] sm:$0xff]
    %v496 = vld [vmem:[#allocation2 + $0x618] sm:$0xff]
    %v497 = vld [vmem:[#allocation2 + $0x620] sm:$0xff]
    %v498 = vld [vmem:[#allocation2 + $0x628] sm:$0xff]
    %v499 = vld [vmem:[#allocation2 + $0x630] sm:$0xff]
    %v500 = vld [vmem:[#allocation2 + $0x638] sm:$0xff]
    %v501 = vld [vmem:[#allocation2 + $0x640] sm:$0xff]
    %v502 = vld [vmem:[#allocation2 + $0x648] sm:$0xff]
    %v503 = vld [vmem:[#allocation2 + $0x650] sm:$0xff]
    %v504 = vld [vmem:[#allocation2 + $0x658] sm:$0xff]
    %v505 = vld [vmem:[#allocation2 + $0x660] sm:$0xff]
    %v506 = vld [vmem:[#allocation2 + $0x668] sm:$0xff]
    %v507 = vld [vmem:[#allocation2 + $0x670] sm:$0xff]
    %v508 = vld [vmem:[#allocation2 + $0x678] sm:$0xff]
    %v509 = vld [vmem:[#allocation2 + $0x680] sm:$0xff]
    %v510 = vld [vmem:[#allocation2 + $0x688] sm:$0xff]
    %v511 = vld [vmem:[#allocation2 + $0x690] sm:$0xff]
    %v512 = vld [vmem:[#allocation2 + $0x698] sm:$0xff]
    %v513 = vld [vmem:[#allocation2 + $0x6a0] sm:$0xff]
    %v514 = vld [vmem:[#allocation2 + $0x6a8] sm:$0xff]
    %v515 = vld [vmem:[#allocation2 + $0x6b0] sm:$0xff]
    %v516 = vld [vmem:[#allocation2 + $0x6b8] sm:$0xff]
    %v517 = vld [vmem:[#allocation2 + $0x6c0] sm:$0xff]
    %v518 = vld [vmem:[#allocation2 + $0x6c8] sm:$0xff]
    %v519 = vld [vmem:[#allocation2 + $0x6d0] sm:$0xff]
    %v520 = vld [vmem:[#allocation2 + $0x6d8] sm:$0xff]
    %v521 = vld [vmem:[#allocation2 + $0x6e0] sm:$0xff]
    %v522 = vld [vmem:[#allocation2 + $0x6e8] sm:$0xff]
    %v523 = vld [vmem:[#allocation2 + $0x6f0] sm:$0xff]
    %v524 = vld [vmem:[#allocation2 + $0x6f8] sm:$0xff]
    %v525 = vld [vmem:[#allocation2 + $0x700] sm:$0xff]
    %v526 = vld [vmem:[#allocation2 + $0x708] sm:$0xff]
    %v527 = vld [vmem:[#allocation2 + $0x710] sm:$0xff]
    %v528 = vld [vmem:[#allocation2 + $0x718] sm:$0xff]
    %v529 = vld [vmem:[#allocation2 + $0x720] sm:$0xff]
    %v530 = vld [vmem:[#allocation2 + $0x728] sm:$0xff]
    %v531 = vld [vmem:[#allocation2 + $0x730] sm:$0xff]
    %v532 = vld [vmem:[#allocation2 + $0x738] sm:$0xff]
    %v533 = vld [vmem:[#allocation2 + $0x740] sm:$0xff]
    %v534 = vld [vmem:[#allocation2 + $0x748] sm:$0xff]
    %v535 = vld [vmem:[#allocation2 + $0x750] sm:$0xff]
    %v536 = vld [vmem:[#allocation2 + $0x758] sm:$0xff]
    %v537 = vld [vmem:[#allocation2 + $0x760] sm:$0xff]
    %v538 = vld [vmem:[#allocation2 + $0x768] sm:$0xff]
    %v539 = vld [vmem:[#allocation2 + $0x770] sm:$0xff]
    %v540 = vld [vmem:[#allocation2 + $0x778] sm:$0xff]
    %v541 = vld [vmem:[#allocation2 + $0x780] sm:$0xff]
    %v542 = vld [vmem:[#allocation2 + $0x788] sm:$0xff]
    %v543 = vld [vmem:[#allocation2 + $0x790] sm:$0xff]
    %v544 = vld [vmem:[#allocation2 + $0x798] sm:$0xff]
    %v545 = vld [vmem:[#allocation2 + $0x7a0] sm:$0xff]
    %v546 = vld [vmem:[#allocation2 + $0x7a8] sm:$0xff]
    %v547 = vld [vmem:[#allocation2 + $0x7b0] sm:$0xff]
    %v548 = vld [vmem:[#allocation2 + $0x7b8] sm:$0xff]
    %v549 = vld [vmem:[#allocation2 + $0x7c0] sm:$0xff]
    %v550 = vld [vmem:[#allocation2 + $0x7c8] sm:$0xff]
    %v551 = vld [vmem:[#allocation2 + $0x7d0] sm:$0xff]
    %v552 = vld [vmem:[#allocation2 + $0x7d8] sm:$0xff]
    %v553 = vld [vmem:[#allocation2 + $0x7e0] sm:$0xff]
    %v554 = vld [vmem:[#allocation2 + $0x7e8] sm:$0xff]
    %v555 = vld [vmem:[#allocation2 + $0x7f0] sm:$0xff]
    %v556 = vld [vmem:[#allocation2 + $0x7f8] sm:$0xff]
    %557 = vmatprep.subr.mxu0 %v492
    %558 = vmatpush1.msra.mxu0 %v491
    %559 = vmatprep.subr.mxu0 %v490
    %560 = vmatpush1.msra.mxu0 %v489
    %561 = vmatprep.subr.mxu0 %v488
    %562 = vmatpush1.msra.mxu0 %v487
    %563 = vmatprep.subr.mxu0 %v486
    %564 = vmatpush1.msra.mxu0 %v485
    %565 = vmatprep.subr.mxu0 %v484
    %566 = vmatpush1.msra.mxu0 %v483
    %567 = vmatprep.subr.mxu0 %v482
    %568 = vmatpush1.msra.mxu0 %v481
    %569 = vmatprep.subr.mxu0 %v480
    %570 = vmatpush1.msra.mxu0 %v479
    %571 = vmatprep.subr.mxu0 %v478
    %572 = vmatpush1.msra.mxu0 %v477
    %573 = vmatprep.subr.mxu0 %v476
    %574 = vmatpush1.msra.mxu0 %v475
    %575 = vmatprep.subr.mxu0 %v474
    %576 = vmatpush1.msra.mxu0 %v473
    %577 = vmatprep.subr.mxu0 %v472
    %578 = vmatpush1.msra.mxu0 %v471
    %579 = vmatprep.subr.mxu0 %v470
    %580 = vmatpush1.msra.mxu0 %v469
    %581 = vmatprep.subr.mxu0 %v468
    %582 = vmatpush1.msra.mxu0 %v467
    %583 = vmatprep.subr.mxu0 %v466
    %584 = vmatpush1.msra.mxu0 %v465
    %585 = vmatprep.subr.mxu0 %v464
    %586 = vmatpush1.msra.mxu0 %v463
    %587 = vmatprep.subr.mxu0 %v462
    %588 = vmatpush1.msra.mxu0 %v461
    %589 = vmatprep.subr.mxu0 %v524
    %590 = vmatpush2.msra.mxu0 %v523
    %591 = vmatprep.subr.mxu0 %v522
    %592 = vmatpush2.msra.mxu0 %v521
    %593 = vmatprep.subr.mxu0 %v520
    %594 = vmatpush2.msra.mxu0 %v519
    %595 = vmatprep.subr.mxu0 %v518
    %596 = vmatpush2.msra.mxu0 %v517
    %597 = vmatprep.subr.mxu0 %v516
    %598 = vmatpush2.msra.mxu0 %v515
    %599 = vmatprep.subr.mxu0 %v514
    %600 = vmatpush2.msra.mxu0 %v513
    %601 = vmatprep.subr.mxu0 %v512
    %602 = vmatpush2.msra.mxu0 %v511
    %603 = vmatprep.subr.mxu0 %v510
    %604 = vmatpush2.msra.mxu0 %v509
    %605 = vmatprep.subr.mxu0 %v508
    %606 = vmatpush2.msra.mxu0 %v507
    %607 = vmatprep.subr.mxu0 %v506
    %608 = vmatpush2.msra.mxu0 %v505
    %609 = vmatprep.subr.mxu0 %v504
    %610 = vmatpush2.msra.mxu0 %v503
    %611 = vmatprep.subr.mxu0 %v502
    %612 = vmatpush2.msra.mxu0 %v501
    %613 = vmatprep.subr.mxu0 %v500
    %614 = vmatpush2.msra.mxu0 %v499
    %615 = vmatprep.subr.mxu0 %v498
    %616 = vmatpush2.msra.mxu0 %v497
    %617 = vmatprep.subr.mxu0 %v496
    %618 = vmatpush2.msra.mxu0 %v495
    %619 = vmatprep.subr.mxu0 %v494
    %620 = vmatpush2.msra.mxu0 %v493
    %621 = vmatprep.mubr.f32.mxu0 %v460
    %622 = vmatmul.mubr.f32.gmra.mxu0 %v453
    %v623 = vpop.f32.mrf.mxu0
    %v624 = vadd.f32 0.0, %v623
    %v625 = vpop.f32.mrf.mxu0
    %v626 = vadd.f32 0.0, %v625
    %627 = vdwg.mxu0
    %628 = vmatprep.subr.mxu0 %v556
    %629 = vmatpush1.msra.mxu0 %v555
    %630 = vmatprep.subr.mxu0 %v554
    %631 = vmatpush1.msra.mxu0 %v553
    %632 = vmatprep.subr.mxu0 %v552
    %633 = vmatpush1.msra.mxu0 %v551
    %634 = vmatprep.subr.mxu0 %v550
    %635 = vmatpush1.msra.mxu0 %v549
    %636 = vmatprep.subr.mxu0 %v548
    %637 = vmatpush1.msra.mxu0 %v547
    %638 = vmatprep.subr.mxu0 %v546
    %639 = vmatpush1.msra.mxu0 %v545
    %640 = vmatprep.subr.mxu0 %v544
    %641 = vmatpush1.msra.mxu0 %v543
    %642 = vmatprep.subr.mxu0 %v542
    %643 = vmatpush1.msra.mxu0 %v541
    %644 = vmatprep.subr.mxu0 %v540
    %645 = vmatpush1.msra.mxu0 %v539
    %646 = vmatprep.subr.mxu0 %v538
    %647 = vmatpush1.msra.mxu0 %v537
    %648 = vmatprep.subr.mxu0 %v536
    %649 = vmatpush1.msra.mxu0 %v535
    %650 = vmatprep.subr.mxu0 %v534
    %651 = vmatpush1.msra.mxu0 %v533
    %652 = vmatprep.subr.mxu0 %v532
    %653 = vmatpush1.msra.mxu0 %v531
    %654 = vmatprep.subr.mxu0 %v530
    %655 = vmatpush1.msra.mxu0 %v529
    %656 = vmatprep.subr.mxu0 %v528
    %657 = vmatpush1.msra.mxu0 %v527
    %658 = vmatprep.subr.mxu0 %v526
    %659 = vmatpush1.msra.mxu0 %v525
    %660 = vmatprep.subr.mxu0 0.0
    %661 = vmatpush2.msra.mxu0 0.0
    %662 = vmatprep.subr.mxu0 0.0
    %663 = vmatpush2.msra.mxu0 0.0
    %664 = vmatprep.subr.mxu0 0.0
    %665 = vmatpush2.msra.mxu0 0.0
    %666 = vmatprep.subr.mxu0 0.0
    %667 = vmatpush2.msra.mxu0 0.0
    %668 = vmatprep.subr.mxu0 0.0
    %669 = vmatpush2.msra.mxu0 0.0
    %670 = vmatprep.subr.mxu0 0.0
    %671 = vmatpush2.msra.mxu0 0.0
    %672 = vmatprep.subr.mxu0 0.0
    %673 = vmatpush2.msra.mxu0 0.0
    %674 = vmatprep.subr.mxu0 0.0
    %675 = vmatpush2.msra.mxu0 0.0
    %676 = vmatprep.subr.mxu0 0.0
    %677 = vmatpush2.msra.mxu0 0.0
    %678 = vmatprep.subr.mxu0 0.0
    %679 = vmatpush2.msra.mxu0 0.0
    %680 = vmatprep.subr.mxu0 0.0
    %681 = vmatpush2.msra.mxu0 0.0
    %682 = vmatprep.subr.mxu0 0.0
    %683 = vmatpush2.msra.mxu0 0.0
    %684 = vmatprep.subr.mxu0 0.0
    %685 = vmatpush2.msra.mxu0 0.0
    %686 = vmatprep.subr.mxu0 0.0
    %687 = vmatpush2.msra.mxu0 0.0
    %688 = vmatprep.subr.mxu0 0.0
    %689 = vmatpush2.msra.mxu0 0.0
    %690 = vmatprep.subr.mxu0 0.0
    %691 = vmatpush2.msra.mxu0 0.0
    %692 = vmatprep.mubr.f32.mxu0 0.0
    %693 = vmatmul.mubr.f32.gmra.mxu0 %v459
    %v694 = vpop.f32.mrf.mxu0
    %v695 = vadd.f32 %v624, %v694
    %v696 = vpop.f32.mrf.mxu0
    %v697 = vadd.f32 %v626, %v696
    %698 = vdwg.mxu0
    %v699 = vld [vmem:[%s2 + $0x2] ss:$0 sm:$0xff]
    %v700 = vadd.f32 %v695, %v699
    %v701 = vld [vmem:[%s2 + $0xa] ss:$0 sm:$0xff]
    %v702 = vadd.f32 %v697, %v701
    %v703 = vmul.f32 %v702, 0.3926991
    %v704 = vadd.f32 %v703, 1.0
    %v705 = vrsqrt.pop %v704
    %v706 = vmul.f32 %v700, %v705
    %v707 = vxor.u32 %v706, 2147483648
    %v708 = vmul.f32 %v707, 1.442695
    %v709 = vpow.pop %v708
    %v710 = vadd.f32 %v709, 1.0
    %v711 = vrcp.pop %v710
    %v712 = vmul.f32 1.0, %v711
    %v713 = vadd.f32 %v700, -0.8813736
    %v714 = vmul.f32 %v713, 1.1715729
    %v715 = vmul.f32 %v702, 0.5390121
    %v716 = vadd.f32 %v715, 1.0
    %v717 = vrsqrt.pop %v716
    %v718 = vmul.f32 %v714, %v717
    %v719 = vxor.u32 %v718, 2147483648
    %v720 = vmul.f32 %v719, 1.442695
    %v721 = vpow.pop %v720
    %v722 = vadd.f32 %v721, 1.0
    %v723 = vrcp.pop %v722
    %v724 = vmul.f32 1.0, %v723
    %v725 = vmul.f32 %v712, %v712
    %v726 = vsub.f32 %v724, %v725
    %v729 = vcombine.low %v712, %v726
    %v731 = vunpack.c.l.s4 1966171168
    %v732 = vunpack.c.0.s8 %v731
    %v733 = vlaneseq
    %v734 = vshrl.u32 %v733, 7
    %v735 = vsub.s32 %v732, %v734
    %v736 = vrot.slane %v729, %v735
    %v738 = vunpack.c.l.s4 1966171168
    %v739 = vunpack.c.0.s8 %v738
    %v740 = vlaneseq
    %v741 = vshrl.u32 %v740, 7
    %v742 = vsub.s32 %v739, %v741
    %v743 = vrot.slane %v736, %v742
    %v745 = vlaneseq
    %vm746 = vcmp.ge.s32.totalorder %v745, 0
    %vm747 = vcmp.lt.s32.totalorder %v745, 256
    %vm748 = vmand %vm746, %vm747
    %749 = vst.msk [vmem:[%s3] sm:$0x3] %vm748, %v743
    // Predicated region
    $region18: #{gosh_forward.1} parent=1 // pred_check
      _
    $region19: #{gosh_forward.1} parent=1 // pred_check_branch
      %751 = sbr.rel (0) target = $region21
    $region20: #{gosh_forward.1} parent=1 // pred_region
      _
    $region21: #{gosh_forward.1} parent=1 // pred_fallthru
      _
    // Predicated region
    $region22: #{gosh_forward.1} parent=1 // pred_check
      _
    $region23: #{gosh_forward.1} parent=1 // pred_check_branch
      %753 = sbr.rel (0) target = $region25
    $region24: #{gosh_forward.1} parent=1 // pred_region
      _
    $region25: #{gosh_forward.1} parent=1 // pred_fallthru
      _
    %754 = vsyncpa [#allocation3], 1

</llo_original>
